<compile_context>
chip_gen: v5e
topology: v5e:2x2
jax: 0.10.0
libtpu: 0.0.40
codegen_flags: <defaults>
</compile_context>

<pallas_src>
import jax
import jax.numpy as jnp
import numpy as np
from jax.experimental import pallas as pl
from jax.experimental.pallas import tpu as pltpu

# ----------------------------------------------------------------------------
# Synthetic, deterministic "params" / tarp_info constants (no file loading).
# ----------------------------------------------------------------------------
FMAX          = 10.0     # tarp_info.Fmax
ELP           = 1e-3     # tarp_info.elp
FORCE_DELAY   = 9.5      # params.force_delay  (must be < Fmax)
COSINE_DELAY  = 0.5      # params.cosine_delay
L1_XI         = 1.0      # params.l1_xi
L1_ETA        = 0.5      # params.l1_eta
L1_RHO        = 0.9      # params.l1_rho      (only used by update_weight)
L1_EPSILON    = 1e-2     # params.l1_epsilon
FMAX_WEIGHT   = 1.0
FDIR_WEIGHT   = 1.0
FNORM1_WEIGHT = 1.0
FMAX_CONS     = True
FDIR_CONS     = True
FNORM1_CONS   = True
MASS, G       = 1.0, 9.8

# hoisted logelp thresholds (python floats, computed once)
ELP_FMAX = FMAX * FORCE_DELAY * 2.0 - FORCE_DELAY ** 2
ELP_FDIR = COSINE_DELAY + 1.0


def _logelp(x, elp):
    # torch: max(elp, self.elp) is a python-scalar max at trace time
    elp = max(elp, ELP)
    return jnp.where(x < elp, -(x / elp - 1.0) ** 2 * jnp.log(x / elp), 0.0)


# ----------------------------------------------------------------------------
# Pallas kernel: difference stencil + all three loss reductions, fully
# batch-vectorized, no MXU, lane-dense over boundary points.
# ----------------------------------------------------------------------------
def _external_force_kernel(f_ref, dpad_ref, bd_ref, w_ref, out_ref):
    # f_ref    : (3, B, N)    force components (x/y/z on the leading axis)
    # dpad_ref : (3, B, N+1)  force_displace zero-padded at both ends per batch
    # bd_ref   : (3, B, N)    boundary_dir components
    # w_ref    : (B, N)       FNorm1 weight
    # out_ref  : (4,) SMEM    [fmax_loss, fdir_loss, fnorm1_loss, total]

    # bmm(transform, disp)[i] = disp[i] - disp[i-1]  (disp[-1]=disp[N-1]=0)
    #  -> pad[..., 1:] - pad[..., :-1]; pure VPU, no MXU push/pop.
    dx = dpad_ref[0]
    dy = dpad_ref[1]
    dz = dpad_ref[2]                                      # (B, N+1)
    fx = f_ref[0] + dx[:, 1:] - dx[:, :-1]                # (B, N)
    fy = f_ref[1] + dy[:, 1:] - dy[:, :-1]
    fz = f_ref[2] + dz[:, 1:] - dz[:, :-1]

    # |f|^2 as 3 elementwise MACs (no cross-lane reduce)
    f2 = fx * fx + fy * fy + fz * fz                      # (B, N)

    # ---- FmaxConstraint ------------------------------------------------
    fmax_pt = _logelp(FMAX * FMAX - f2, ELP_FMAX)         # (B, N)

    # ---- FdirConstraint --------------------------------------------------
    # forces_mag > eps  <=>  f2 > eps^2 ; discarded branch value = 1+1+1 = 3.
    # rsqrt on the EUP instead of sqrt + vector divide; the max() keeps the
    # discarded branch finite (no 0/0) without changing the selected branch.
    eps2 = L1_EPSILON * L1_EPSILON
    inv_mag = jax.lax.rsqrt(jnp.maximum(f2, eps2))        # (B, N)
    dot_bf = bd_ref[0] * fx + bd_ref[1] * fy + bd_ref[2] * fz
    inner = jnp.where(f2 > eps2, dot_bf * inv_mag, 3.0)
    fdir_pt = _logelp(inner + 1.0, ELP_FDIR)              # (B, N)

    # ---- FNorm1 ----------------------------------------------------------
    fnorm1_pt = jnp.sqrt(f2 + L1_EPSILON) * w_ref[...]    # (B, N)

    # Deferred reductions: one jnp.sum per loss, no per-batch scalar chain.
    fmax_loss = (FMAX_WEIGHT * jnp.sum(fmax_pt)) if FMAX_CONS else jnp.float32(0.0)
    fdir_loss = (FDIR_WEIGHT * jnp.sum(fdir_pt)) if FDIR_CONS else jnp.float32(0.0)
    fnorm1_loss = (FNORM1_WEIGHT * jnp.sum(fnorm1_pt)) if FNORM1_CONS else jnp.float32(0.0)

    out_ref[0] = fmax_loss
    out_ref[1] = fdir_loss
    out_ref[2] = fnorm1_loss
    out_ref[3] = fmax_loss + fdir_loss + fnorm1_loss


def external_force_forward(force, transform, force_displace, boundary_dir, weight):
    """Returns (total_loss, fmax_loss, fdir_loss, fnorm1_loss).

    Accepts the module's native layouts:
      force (B,N,3), transform (B,N,N-1), force_displace (B,N-1,3),
      boundary_dir (B,N,3), weight (B,N,1).
    """
    # `transform` is always the fixed first-difference matrix constructed in
    # __init__; the kernel exploits that structure instead of a general bmm
    # (per perf review), so it is not shipped to the device kernel.
    del transform
    B, N, _ = force.shape
    f32 = jnp.float32

    # Layout plumbing (wrapper side): xyz -> leading axis, points -> lanes.
    f_t = jnp.transpose(force.astype(f32), (2, 0, 1))            # (3, B, N)
    bd_t = jnp.transpose(boundary_dir.astype(f32), (2, 0, 1))    # (3, B, N)
    w_t = weight.astype(f32)[..., 0]                             # (B, N)
    d_t = jnp.transpose(force_displace.astype(f32), (2, 0, 1))   # (3, B, N-1)
    d_pad = jnp.pad(d_t, ((0, 0), (0, 0), (1, 1)))               # (3, B, N+1)

    in_bytes = 4 * (f_t.size + bd_t.size + w_t.size + d_pad.size)
    vmem = pl.BlockSpec(memory_space=pltpu.MemorySpace.VMEM)

    out = pl.pallas_call(
        _external_force_kernel,
        out_shape=jax.ShapeDtypeStruct((4,), jnp.float32),
        in_specs=[vmem, vmem, vmem, vmem],
        out_specs=pl.BlockSpec(memory_space=pltpu.MemorySpace.SMEM),
        cost_estimate=pl.CostEstimate(
            flops=40 * B * N,
            transcendentals=4 * B * N,
            bytes_accessed=in_bytes + 16,
        ),
    )(f_t, d_pad, bd_t, w_t)
    return out[3], out[0], out[1], out[2]


# ----------------------------------------------------------------------------
# Pure-JAX reference (mirrors the PyTorch forward, general bmm) for sanity.
# ----------------------------------------------------------------------------
def reference_forward(force, transform, force_displace, boundary_dir, weight):
    forces = force + jnp.einsum('bnk,bkd->bnd', transform, force_displace,
                                precision=jax.lax.Precision.HIGHEST)
    f2 = jnp.sum(forces ** 2, axis=2)
    fmax = jnp.sum(_logelp(FMAX ** 2 - f2, ELP_FMAX)) * FMAX_WEIGHT
    fmag = jnp.sqrt(f2)[..., None]
    inner = jnp.sum(jnp.where(fmag > L1_EPSILON,
                              boundary_dir * forces / fmag, 1.0), axis=2)
    fdir = jnp.sum(_logelp(inner + 1.0, ELP_FDIR)) * FDIR_WEIGHT
    fn1 = jnp.sum(jnp.sqrt(f2 + L1_EPSILON) * weight[..., 0]) * FNORM1_WEIGHT
    return fmax + fdir + fn1


if __name__ == "__main__":
    key = jax.random.PRNGKey(0)
    kv, kf, kd = jax.random.split(key, 3)

    B, N, V = 2, 8, 16                     # batch, boundary points, vertices
    dtype = jnp.float32

    # vertices and boundary / center indices (tarp_info.C / tarp_info.CI)
    vertices = jax.random.normal(kv, (B, V, 3), dtype=dtype)
    C = jnp.arange(N, dtype=jnp.int32)     # boundary vertex indices
    CI = N                                 # center vertex index

    # force buffer (get_init_force): z = mass*g/N, xy deterministic synthetic.
    # TODO(synk): tool.force_SOCP (external cone-program solver) has no Pallas
    # equivalent; its xy result is replaced by a deterministic synthetic init.
    avg_w = MASS * G / N
    fxy = 0.5 * jax.random.normal(kf, (B, N, 2), dtype=dtype)
    force = jnp.concatenate([fxy, jnp.full((B, N, 1), avg_w, dtype)], axis=2)

    # force_displace parameter (zeros in __init__; use small deterministic
    # values so the difference path is non-trivial)
    force_displace = 0.1 * jax.random.normal(kd, (B, N - 1, 3), dtype=dtype)

    # transform buffer: transform[:, i, i] = 1, transform[:, i+1, i] = -1
    transform = jnp.broadcast_to(
        jnp.eye(N, N - 1, dtype=dtype) - jnp.eye(N, N - 1, k=-1, dtype=dtype),
        (B, N, N - 1))

    # boundary_dir (update_boudary_dir): xy direction boundary -> center, z=0
    bd = vertices[:, C, :] - vertices[:, CI][:, None, :]
    bd = bd.at[:, :, 2].set(0.0)
    boundary_dir = bd / jnp.linalg.norm(bd, axis=2, keepdims=True)

    # weight buffer (update_weight semantics), detached setup in plain JAX
    now_force = force + jnp.einsum('bnk,bkd->bnd', transform, force_displace,
                                   precision=jax.lax.Precision.HIGHEST)
    wmag = jnp.sqrt(jnp.sum(now_force ** 2, axis=2) + L1_EPSILON)
    weight = jnp.power(wmag + L1_XI, L1_ETA - 1.0)[..., None]        # (B, N, 1)

    total, fmax_l, fdir_l, fn1_l = external_force_forward(
        force, transform, force_displace, boundary_dir, weight)
    total = jax.block_until_ready(total)

    ref = jax.block_until_ready(
        reference_forward(force, transform, force_displace, boundary_dir, weight))

    assert np.isfinite(float(total)), "kernel produced non-finite loss"
    np.testing.assert_allclose(float(total), float(ref), rtol=1e-3, atol=1e-3)

    print("KERNEL_OK")
</pallas_src>

<mosaic_0001>
module attributes {stable_mosaic.version = 11 : i64} {
  func.func @_external_force_kernel(%arg0: memref<3x2x8xf32, #tpu.memory_space<vmem>>, %arg1: memref<3x2x9xf32, #tpu.memory_space<vmem>>, %arg2: memref<3x2x8xf32, #tpu.memory_space<vmem>>, %arg3: memref<2x8xf32, #tpu.memory_space<vmem>>, %arg4: memref<4xf32, #tpu.memory_space<smem>>) attributes {dimension_semantics = [], scalar_prefetch = 0 : i64, scratch_operands = 0 : i64, tpu.core_type = #tpu.core_type<tc>} {
    %c0 = arith.constant 0 : index
    %c0_0 = arith.constant 0 : index
    %c0_1 = arith.constant 0 : index
    %0 = vector.load %arg1[%c0, %c0_0, %c0_1] : memref<3x2x9xf32, #tpu.memory_space<vmem>>, vector<1x2x9xf32>
    %1 = vector.shape_cast %0 : vector<1x2x9xf32> to vector<2x9xf32>
    %c1 = arith.constant 1 : index
    %c0_2 = arith.constant 0 : index
    %c0_3 = arith.constant 0 : index
    %2 = vector.load %arg1[%c1, %c0_2, %c0_3] : memref<3x2x9xf32, #tpu.memory_space<vmem>>, vector<1x2x9xf32>
    %3 = vector.shape_cast %2 : vector<1x2x9xf32> to vector<2x9xf32>
    %c2 = arith.constant 2 : index
    %c0_4 = arith.constant 0 : index
    %c0_5 = arith.constant 0 : index
    %4 = vector.load %arg1[%c2, %c0_4, %c0_5] : memref<3x2x9xf32, #tpu.memory_space<vmem>>, vector<1x2x9xf32>
    %5 = vector.shape_cast %4 : vector<1x2x9xf32> to vector<2x9xf32>
    %c0_6 = arith.constant 0 : index
    %c0_7 = arith.constant 0 : index
    %c0_8 = arith.constant 0 : index
    %6 = vector.load %arg0[%c0_6, %c0_7, %c0_8] : memref<3x2x8xf32, #tpu.memory_space<vmem>>, vector<1x2x8xf32>
    %7 = vector.shape_cast %6 : vector<1x2x8xf32> to vector<2x8xf32>
    %8 = vector.extract_strided_slice %1 {offsets = [0, 1], sizes = [2, 8], strides = [1, 1]} : vector<2x9xf32> to vector<2x8xf32>
    %9 = arith.addf %7, %8 : vector<2x8xf32>
    %10 = vector.extract_strided_slice %1 {offsets = [0, 0], sizes = [2, 8], strides = [1, 1]} : vector<2x9xf32> to vector<2x8xf32>
    %11 = arith.subf %9, %10 : vector<2x8xf32>
    %c1_9 = arith.constant 1 : index
    %c0_10 = arith.constant 0 : index
    %c0_11 = arith.constant 0 : index
    %12 = vector.load %arg0[%c1_9, %c0_10, %c0_11] : memref<3x2x8xf32, #tpu.memory_space<vmem>>, vector<1x2x8xf32>
    %13 = vector.shape_cast %12 : vector<1x2x8xf32> to vector<2x8xf32>
    %14 = vector.extract_strided_slice %3 {offsets = [0, 1], sizes = [2, 8], strides = [1, 1]} : vector<2x9xf32> to vector<2x8xf32>
    %15 = arith.addf %13, %14 : vector<2x8xf32>
    %16 = vector.extract_strided_slice %3 {offsets = [0, 0], sizes = [2, 8], strides = [1, 1]} : vector<2x9xf32> to vector<2x8xf32>
    %17 = arith.subf %15, %16 : vector<2x8xf32>
    %c2_12 = arith.constant 2 : index
    %c0_13 = arith.constant 0 : index
    %c0_14 = arith.constant 0 : index
    %18 = vector.load %arg0[%c2_12, %c0_13, %c0_14] : memref<3x2x8xf32, #tpu.memory_space<vmem>>, vector<1x2x8xf32>
    %19 = vector.shape_cast %18 : vector<1x2x8xf32> to vector<2x8xf32>
    %20 = vector.extract_strided_slice %5 {offsets = [0, 1], sizes = [2, 8], strides = [1, 1]} : vector<2x9xf32> to vector<2x8xf32>
    %21 = arith.addf %19, %20 : vector<2x8xf32>
    %22 = vector.extract_strided_slice %5 {offsets = [0, 0], sizes = [2, 8], strides = [1, 1]} : vector<2x9xf32> to vector<2x8xf32>
    %23 = arith.subf %21, %22 : vector<2x8xf32>
    %24 = arith.mulf %11, %11 : vector<2x8xf32>
    %25 = arith.mulf %17, %17 : vector<2x8xf32>
    %26 = arith.addf %24, %25 : vector<2x8xf32>
    %27 = arith.mulf %23, %23 : vector<2x8xf32>
    %28 = arith.addf %26, %27 : vector<2x8xf32>
    %cst = arith.constant 1.000000e+02 : f32
    %29 = vector.broadcast %cst : f32 to vector<2x8xf32>
    %30 = arith.subf %29, %28 : vector<2x8xf32>
    %cst_15 = arith.constant 9.975000e+01 : f32
    %31 = vector.broadcast %cst_15 : f32 to vector<2x8xf32>
    %32 = arith.cmpf olt, %30, %31 : vector<2x8xf32>
    %cst_16 = arith.constant 9.975000e+01 : f32
    %33 = vector.broadcast %cst_16 : f32 to vector<2x8xf32>
    %34 = arith.divf %30, %33 : vector<2x8xf32>
    %cst_17 = arith.constant 1.000000e+00 : f32
    %35 = vector.broadcast %cst_17 : f32 to vector<2x8xf32>
    %36 = arith.subf %34, %35 : vector<2x8xf32>
    %37 = arith.mulf %36, %36 : vector<2x8xf32>
    %cst_18 = arith.constant 0.000000e+00 : f32
    %38 = vector.broadcast %cst_18 : f32 to vector<2x8xf32>
    %39 = arith.subf %38, %37 : vector<2x8xf32>
    %cst_19 = arith.constant 9.975000e+01 : f32
    %40 = vector.broadcast %cst_19 : f32 to vector<2x8xf32>
    %41 = arith.divf %30, %40 : vector<2x8xf32>
    %42 = math.log %41 : vector<2x8xf32>
    %43 = arith.mulf %39, %42 : vector<2x8xf32>
    %cst_20 = arith.constant 0.000000e+00 : f32
    %44 = vector.broadcast %cst_20 : f32 to vector<2x8xf32>
    %45 = arith.select %32, %43, %44 : vector<2x8xi1>, vector<2x8xf32>
    %cst_21 = arith.constant 9.99999974E-5 : f32
    %46 = vector.broadcast %cst_21 : f32 to vector<2x8xf32>
    %47 = arith.maximumf %28, %46 : vector<2x8xf32>
    %48 = math.rsqrt %47 : vector<2x8xf32>
    %c0_22 = arith.constant 0 : index
    %c0_23 = arith.constant 0 : index
    %c0_24 = arith.constant 0 : index
    %49 = vector.load %arg2[%c0_22, %c0_23, %c0_24] : memref<3x2x8xf32, #tpu.memory_space<vmem>>, vector<1x2x8xf32>
    %50 = vector.shape_cast %49 : vector<1x2x8xf32> to vector<2x8xf32>
    %51 = arith.mulf %50, %11 : vector<2x8xf32>
    %c1_25 = arith.constant 1 : index
    %c0_26 = arith.constant 0 : index
    %c0_27 = arith.constant 0 : index
    %52 = vector.load %arg2[%c1_25, %c0_26, %c0_27] : memref<3x2x8xf32, #tpu.memory_space<vmem>>, vector<1x2x8xf32>
    %53 = vector.shape_cast %52 : vector<1x2x8xf32> to vector<2x8xf32>
    %54 = arith.mulf %53, %17 : vector<2x8xf32>
    %55 = arith.addf %51, %54 : vector<2x8xf32>
    %c2_28 = arith.constant 2 : index
    %c0_29 = arith.constant 0 : index
    %c0_30 = arith.constant 0 : index
    %56 = vector.load %arg2[%c2_28, %c0_29, %c0_30] : memref<3x2x8xf32, #tpu.memory_space<vmem>>, vector<1x2x8xf32>
    %57 = vector.shape_cast %56 : vector<1x2x8xf32> to vector<2x8xf32>
    %58 = arith.mulf %57, %23 : vector<2x8xf32>
    %59 = arith.addf %55, %58 : vector<2x8xf32>
    %cst_31 = arith.constant 9.99999974E-5 : f32
    %60 = vector.broadcast %cst_31 : f32 to vector<2x8xf32>
    %61 = arith.cmpf ogt, %28, %60 : vector<2x8xf32>
    %62 = arith.mulf %59, %48 : vector<2x8xf32>
    %cst_32 = arith.constant 3.000000e+00 : f32
    %63 = vector.broadcast %cst_32 : f32 to vector<2x8xf32>
    %64 = arith.select %61, %62, %63 : vector<2x8xi1>, vector<2x8xf32>
    %cst_33 = arith.constant 1.000000e+00 : f32
    %65 = vector.broadcast %cst_33 : f32 to vector<2x8xf32>
    %66 = arith.addf %64, %65 : vector<2x8xf32>
    %cst_34 = arith.constant 1.500000e+00 : f32
    %67 = vector.broadcast %cst_34 : f32 to vector<2x8xf32>
    %68 = arith.cmpf olt, %66, %67 : vector<2x8xf32>
    %cst_35 = arith.constant 1.500000e+00 : f32
    %69 = vector.broadcast %cst_35 : f32 to vector<2x8xf32>
    %70 = arith.divf %66, %69 : vector<2x8xf32>
    %cst_36 = arith.constant 1.000000e+00 : f32
    %71 = vector.broadcast %cst_36 : f32 to vector<2x8xf32>
    %72 = arith.subf %70, %71 : vector<2x8xf32>
    %73 = arith.mulf %72, %72 : vector<2x8xf32>
    %cst_37 = arith.constant 0.000000e+00 : f32
    %74 = vector.broadcast %cst_37 : f32 to vector<2x8xf32>
    %75 = arith.subf %74, %73 : vector<2x8xf32>
    %cst_38 = arith.constant 1.500000e+00 : f32
    %76 = vector.broadcast %cst_38 : f32 to vector<2x8xf32>
    %77 = arith.divf %66, %76 : vector<2x8xf32>
    %78 = math.log %77 : vector<2x8xf32>
    %79 = arith.mulf %75, %78 : vector<2x8xf32>
    %cst_39 = arith.constant 0.000000e+00 : f32
    %80 = vector.broadcast %cst_39 : f32 to vector<2x8xf32>
    %81 = arith.select %68, %79, %80 : vector<2x8xi1>, vector<2x8xf32>
    %cst_40 = arith.constant 0.00999999977 : f32
    %82 = vector.broadcast %cst_40 : f32 to vector<2x8xf32>
    %83 = arith.addf %28, %82 : vector<2x8xf32>
    %84 = math.sqrt %83 : vector<2x8xf32>
    %c0_41 = arith.constant 0 : index
    %c0_42 = arith.constant 0 : index
    %85 = vector.load %arg3[%c0_41, %c0_42] : memref<2x8xf32, #tpu.memory_space<vmem>>, vector<2x8xf32>
    %86 = arith.mulf %84, %85 : vector<2x8xf32>
    %87 = vector.shape_cast %45 : vector<2x8xf32> to vector<1x2x8xf32>
    %cst_43 = arith.constant dense<0.000000e+00> : vector<1xf32>
    %88 = vector.multi_reduction <add>, %87, %cst_43 [1, 2] : vector<1x2x8xf32> to vector<1xf32>
    %89 = vector.shape_cast %88 : vector<1xf32> to vector<1x1x1xf32>
    %90 = vector.extract %89[0, 0, 0] : f32 from vector<1x1x1xf32>
    %cst_44 = arith.constant 1.000000e+00 : f32
    %91 = arith.mulf %cst_44, %90 : f32
    %92 = vector.shape_cast %81 : vector<2x8xf32> to vector<1x2x8xf32>
    %cst_45 = arith.constant dense<0.000000e+00> : vector<1xf32>
    %93 = vector.multi_reduction <add>, %92, %cst_45 [1, 2] : vector<1x2x8xf32> to vector<1xf32>
    %94 = vector.shape_cast %93 : vector<1xf32> to vector<1x1x1xf32>
    %95 = vector.extract %94[0, 0, 0] : f32 from vector<1x1x1xf32>
    %cst_46 = arith.constant 1.000000e+00 : f32
    %96 = arith.mulf %cst_46, %95 : f32
    %97 = vector.shape_cast %86 : vector<2x8xf32> to vector<1x2x8xf32>
    %cst_47 = arith.constant dense<0.000000e+00> : vector<1xf32>
    %98 = vector.multi_reduction <add>, %97, %cst_47 [1, 2] : vector<1x2x8xf32> to vector<1xf32>
    %99 = vector.shape_cast %98 : vector<1xf32> to vector<1x1x1xf32>
    %100 = vector.extract %99[0, 0, 0] : f32 from vector<1x1x1xf32>
    %cst_48 = arith.constant 1.000000e+00 : f32
    %101 = arith.mulf %cst_48, %100 : f32
    %c0_49 = arith.constant 0 : index
    %102 = memref.load %arg4[%c0_49] : memref<4xf32, #tpu.memory_space<smem>>
    memref.store %91, %arg4[%c0_49] : memref<4xf32, #tpu.memory_space<smem>>
    %c1_50 = arith.constant 1 : index
    %103 = memref.load %arg4[%c1_50] : memref<4xf32, #tpu.memory_space<smem>>
    memref.store %96, %arg4[%c1_50] : memref<4xf32, #tpu.memory_space<smem>>
    %c2_51 = arith.constant 2 : index
    %104 = memref.load %arg4[%c2_51] : memref<4xf32, #tpu.memory_space<smem>>
    memref.store %101, %arg4[%c2_51] : memref<4xf32, #tpu.memory_space<smem>>
    %105 = arith.addf %91, %96 : f32
    %106 = arith.addf %105, %101 : f32
    %c3 = arith.constant 3 : index
    %107 = memref.load %arg4[%c3] : memref<4xf32, #tpu.memory_space<smem>>
    memref.store %106, %arg4[%c3] : memref<4xf32, #tpu.memory_space<smem>>
    return
  }
}

</mosaic_0001>

<llo_original>
// kernel: tpu_custom_call.1
$region0: #{tpu_custom_call.1}
  #allocation0 [shape = 'u32[]', space=smem, size = 0x4, offset = 0x4, fixed_abs, tag = 'smem constant byte address 0x4 - core index']
  #allocation1 [shape = 'u32[72,128]{1,0:T(1,128)}', space=vmem, size = 0x9000, scoped, tag = 'internal scratch']
  %s0 = inlined_call_operand.hbm [shape: f32[3,2,8], index: 0, kind: input, shape index: {}]
  %s1 = inlined_call_operand.hbm [shape: f32[3,2,9], index: 1, kind: input, shape index: {}]
  %s2 = inlined_call_operand.hbm [shape: f32[3,2,8], index: 2, kind: input, shape index: {}]
  %s3 = inlined_call_operand.vmem [shape: f32[2,8], index: 3, kind: input, shape index: {}]
  %s4 = inlined_call_operand.hbm [shape: f32[4], index: 4, kind: output, shape index: {}]
  %s5 = sld [smem:[#allocation0]]
  $region38: #{tpu_custom_call.1} parent=0
    _
  %s7 = ssub.s32 1, %s5
  %s8 = scalar_select 0, %s7, %s5
  $region1: #{tpu_custom_call.1} parent=0
    #allocation2 [shape = 'u8[3072]{0}', space=vmem, size = 0xc00, scoped, tag = 'input window, operand 0, single buffered']
    #allocation3 [shape = 's32[1]{0}', space=sflag, size = 0x4, scoped, tag = 'scoped memory for tpu_custom_call.1']
    #allocation4 [shape = 's32[1]{0}', space=sflag, size = 0x4, scoped, tag = 'scoped memory for tpu_custom_call.1']
    #allocation5 [shape = 'u8[3072]{0}', space=vmem, size = 0xc00, scoped, tag = 'input window, operand 1, single buffered']
    #allocation6 [shape = 's32[1]{0}', space=sflag, size = 0x4, scoped, tag = 'scoped memory for tpu_custom_call.1']
    #allocation7 [shape = 'u8[3072]{0}', space=vmem, size = 0xc00, scoped, tag = 'input window, operand 2, single buffered']
    #allocation8 [shape = 'u8[512]{0}', space=smem, size = 0x200, scoped, tag = 'output window, operand 0, single buffered']
    %9 = vsyncpa [#allocation3], 0
    %10 = vsyncpa [#allocation6], 0
    %11 = vsyncpa [#allocation4], 0
    // Predicated region
    $region2: #{tpu_custom_call.1} parent=1 // pred_check
      _
    $region3: #{tpu_custom_call.1} parent=1 // pred_check_branch
      %13 = sbr.rel (0) target = $region5
    $region4: #{tpu_custom_call.1} parent=1 // pred_region
      %15 = vsyncadd [#allocation3], 0
      %s16 = sshll.u32 %s0, 4
      %s17 = int_to_ptr.hbm [resolvable:$true] %s16
      %s18 = sshll.u32 [#allocation2], 4
      %s19 = int_to_ptr.vmem [resolvable:$true] %s18
      %24 = dma.hbm_to_vmem [thread:$0]  %s17, 96, %s19, [#allocation3], 32, 32, 2
    $region5: #{tpu_custom_call.1} parent=1 // pred_fallthru
      _
    // Predicated region
    $region6: #{tpu_custom_call.1} parent=1 // pred_check
      _
    $region7: #{tpu_custom_call.1} parent=1 // pred_check_branch
      %26 = sbr.rel (0) target = $region9
    $region8: #{tpu_custom_call.1} parent=1 // pred_region
      %28 = vsyncadd [#allocation6], 0
      %s29 = sshll.u32 %s1, 4
      %s30 = int_to_ptr.hbm [resolvable:$true] %s29
      %s31 = sshll.u32 [#allocation5], 4
      %s32 = int_to_ptr.vmem [resolvable:$true] %s31
      %37 = dma.hbm_to_vmem [thread:$0]  %s30, 96, %s32, [#allocation6], 32, 32, 2
    $region9: #{tpu_custom_call.1} parent=1 // pred_fallthru
      _
    // Predicated region
    $region10: #{tpu_custom_call.1} parent=1 // pred_check
      _
    $region11: #{tpu_custom_call.1} parent=1 // pred_check_branch
      %39 = sbr.rel (0) target = $region13
    $region12: #{tpu_custom_call.1} parent=1 // pred_region
      %41 = vsyncadd [#allocation6], 0
      %s42 = sshll.u32 %s2, 4
      %s43 = int_to_ptr.hbm [resolvable:$true] %s42
      %s44 = sshll.u32 [#allocation7], 4
      %s45 = int_to_ptr.vmem [resolvable:$true] %s44
      %50 = dma.hbm_to_vmem [thread:$0]  %s43, 96, %s45, [#allocation6], 32, 32, 2
    $region13: #{tpu_custom_call.1} parent=1 // pred_fallthru
      _
    // Predicated region
    $region14: #{tpu_custom_call.1} parent=1 // pred_check
      _
    $region15: #{tpu_custom_call.1} parent=1 // pred_check_branch
      %52 = sbr.rel (0) target = $region17
    $region16: #{tpu_custom_call.1} parent=1 // pred_region
      _
    $region17: #{tpu_custom_call.1} parent=1 // pred_fallthru
      _
    // Predicated region
    $region18: #{tpu_custom_call.1} parent=1 // pred_check
      _
    $region19: #{tpu_custom_call.1} parent=1 // pred_check_branch
      %54 = sbr.rel (0) target = $region21
    $region20: #{tpu_custom_call.1} parent=1 // pred_region
      %56 = dma.done [#allocation3], 96
    $region21: #{tpu_custom_call.1} parent=1 // pred_fallthru
      _
    // Predicated region
    $region22: #{tpu_custom_call.1} parent=1 // pred_check
      _
    $region23: #{tpu_custom_call.1} parent=1 // pred_check_branch
      %58 = sbr.rel (0) target = $region25
    $region24: #{tpu_custom_call.1} parent=1 // pred_region
      %60 = dma.done [#allocation6], 96
    $region25: #{tpu_custom_call.1} parent=1 // pred_fallthru
      _
    // Predicated region
    $region26: #{tpu_custom_call.1} parent=1 // pred_check
      _
    $region27: #{tpu_custom_call.1} parent=1 // pred_check_branch
      %62 = sbr.rel (0) target = $region29
    $region28: #{tpu_custom_call.1} parent=1 // pred_region
      %64 = dma.done [#allocation6], 96
    $region29: #{tpu_custom_call.1} parent=1 // pred_fallthru
      _
    %v65 = vld [vmem:[#allocation5] sm:$0x3]
    %s66 = scalar_lea.vmem [#allocation5], 2
    %v67 = vld [vmem:[%s66] sm:$0x3]
    %s68 = scalar_lea.vmem [#allocation5], 4
    %v69 = vld [vmem:[%s68] sm:$0x3]
    %v70 = vld [vmem:[#allocation2] sm:$0x3]
    %72 = vrot.lane.b32.xlu0 %v65, 127
    %v73 = vpop.permute.xlu0 %72
    %v75 = vadd.f32 %v70, %v73
    %v76 = vsub.f32 %v75, %v65
    %s77 = scalar_lea.vmem [#allocation2], 2
    %v78 = vld [vmem:[%s77] sm:$0x3]
    %80 = vrot.lane.b32.xlu0 %v67, 127
    %v81 = vpop.permute.xlu0 %80
    %v83 = vadd.f32 %v78, %v81
    %v84 = vsub.f32 %v83, %v67
    %s85 = scalar_lea.vmem [#allocation2], 4
    %v86 = vld [vmem:[%s85] sm:$0x3]
    %88 = vrot.lane.b32.xlu0 %v69, 127
    %v89 = vpop.permute.xlu0 %88
    %v91 = vadd.f32 %v86, %v89
    %v92 = vsub.f32 %v91, %v69
    %v93 = vmul.f32 %v76, %v76
    %v94 = vmul.f32 %v84, %v84
    %v95 = vadd.f32 %v93, %v94
    %v96 = vmul.f32 %v92, %v92
    %v97 = vadd.f32 %v95, %v96
    %v98 = vsub.f32 100.0, %v97
    %vm99 = vcmp.lt.f32.partialorder %v98, 99.75
    %v100 = vrcp.pop 99.75
    %v101 = vmul.f32 99.75, %v100
    %v102 = vsub.f32 1.0, %v101
    %v103 = vmul.f32 %v100, %v102
    %v104 = vadd.f32 %v100, %v103
    %vm105 = vweird.f32 %v100
    %v106 = vsel %vm105, %v100, %v104
    %v107 = vmul.f32 %v98, %v106
    %v108 = vsub.f32 %v107, 1.0
    %v109 = vmul.f32 %v108, %v108
    %v110 = vsub.f32 0.0, %v109
    %v111 = vlog2.pop %v107
    %v112 = vmul.f32 %v111, 0.6931472
    %v113 = vmul.f32 %v110, %v112
    %v114 = vsel %vm99, %v113, 0.0
    %v115 = vmax.f32 %v97, 0.0001
    %v116 = vrsqrt.pop %v115
    %v117 = vmul.f32 %v116, %v115
    %v118 = vmul.f32 %v117, %v116
    %v119 = vmul.f32 0.5, %v118
    %v120 = vsub.f32 1.5, %v119
    %v121 = vmul.f32 %v116, %v120
    %vm122 = vweird.f32 %v115
    %vm123 = vweird.f32 %v116
    %vm124 = vmor %vm122, %vm123
    %v125 = vsel %vm124, %v116, %v121
    %v126 = vld [vmem:[#allocation7] sm:$0x3]
    %v127 = vmul.f32 %v126, %v76
    %s128 = scalar_lea.vmem [#allocation7], 2
    %v129 = vld [vmem:[%s128] sm:$0x3]
    %v130 = vmul.f32 %v129, %v84
    %v131 = vadd.f32 %v127, %v130
    %s132 = scalar_lea.vmem [#allocation7], 4
    %v133 = vld [vmem:[%s132] sm:$0x3]
    %v134 = vmul.f32 %v133, %v92
    %v135 = vadd.f32 %v131, %v134
    %vm136 = vcmp.gt.f32.partialorder %v97, 0.0001
    %v137 = vmul.f32 %v135, %v125
    %v138 = vsel %vm136, %v137, 3.0
    %v139 = vadd.f32 %v138, 1.0
    %vm140 = vcmp.lt.f32.partialorder %v139, 1.5
    %v141 = vrcp.pop 1.5
    %v142 = vmul.f32 1.5, %v141
    %v143 = vsub.f32 1.0, %v142
    %v144 = vmul.f32 %v141, %v143
    %v145 = vadd.f32 %v141, %v144
    %vm146 = vweird.f32 %v141
    %v147 = vsel %vm146, %v141, %v145
    %v148 = vmul.f32 %v139, %v147
    %v149 = vsub.f32 %v148, 1.0
    %v150 = vmul.f32 %v149, %v149
    %v151 = vsub.f32 0.0, %v150
    %v152 = vlog2.pop %v148
    %v153 = vmul.f32 %v152, 0.6931472
    %v154 = vmul.f32 %v151, %v153
    %v155 = vsel %vm140, %v154, 0.0
    %v156 = vadd.f32 %v97, 0.01
    %v157 = vrsqrt.pop %v156
    %v158 = vmul.f32 %v157, %v156
    %v159 = vmul.f32 %v158, %v157
    %v160 = vmul.f32 0.5, %v159
    %v161 = vsub.f32 1.5, %v160
    %v162 = vmul.f32 %v157, %v161
    %v163 = vmul.f32 %v156, %v162
    %vm164 = vcmp.eq.f32.partialorder %v156, inf
    %v165 = vsel %vm164, %v156, %v163
    %vm166 = vcmp.eq.f32.partialorder %v156, 0.0
    %v167 = vand.u32 %v156, 2147483648
    %v168 = vsel %vm166, %v167, %v165
    %v169 = vld [vmem:[%s3] sm:$0x3]
    %v170 = vmul.f32 %v168, %v169
    %vm171 = vcmask 58368
    %v172 = vsel %vm171, %v114, 0.0
    %173 = vadd.xlane.f32.xlu0 %v172
    %v174 = vpop.xlane.xlu0 %173
    %v175 = vrot.slane %v174, 4
    %v176 = vadd.f32 %v174, %v175
    %v177 = vrot.slane %v176, 2
    %v178 = vadd.f32 %v176, %v177
    %v179 = vrot.slane %v178, 1
    %v180 = vadd.f32 %v178, %v179
    %s181 = vtos %v180
    %v182 = vsel %vm171, %v155, 0.0
    %183 = vadd.xlane.f32.xlu0 %v182
    %v184 = vpop.xlane.xlu0 %183
    %v185 = vrot.slane %v184, 4
    %v186 = vadd.f32 %v184, %v185
    %v187 = vrot.slane %v186, 2
    %v188 = vadd.f32 %v186, %v187
    %v189 = vrot.slane %v188, 1
    %v190 = vadd.f32 %v188, %v189
    %s191 = vtos %v190
    %v192 = vsel %vm171, %v170, 0.0
    %193 = vadd.xlane.f32.xlu0 %v192
    %v194 = vpop.xlane.xlu0 %193
    %v195 = vrot.slane %v194, 4
    %v196 = vadd.f32 %v194, %v195
    %v197 = vrot.slane %v196, 2
    %v198 = vadd.f32 %v196, %v197
    %v199 = vrot.slane %v198, 1
    %v200 = vadd.f32 %v198, %v199
    %s201 = vtos %v200
    %s202 = scalar_lea.smem [#allocation8], 0
    %203 = sst [smem:[%s202]] %s181
    %s204 = scalar_lea.smem [#allocation8], 1
    %205 = sst [smem:[%s204]] %s191
    %s206 = scalar_lea.smem [#allocation8], 2
    %207 = sst [smem:[%s206]] %s201
    %s208 = sadd.f32 %s181, %s191
    %s209 = sadd.f32 %s208, %s201
    %s210 = scalar_lea.smem [#allocation8], 3
    %211 = sst [smem:[%s210]] %s209
    // Predicated region
    $region30: #{tpu_custom_call.1} parent=1 // pred_check
      _
    $region31: #{tpu_custom_call.1} parent=1 // pred_check_branch
      %213 = sbr.rel (0) target = $region33
    $region32: #{tpu_custom_call.1} parent=1 // pred_region
      %215 = vsyncadd [#allocation4], 0
      %s217 = sshll.u32 %s4, 4
      %s218 = int_to_ptr.hbm [resolvable:$true] %s217
      %220 = dma.smem_to_hbm [#allocation8], 16, %s218, [#allocation4]
    $region33: #{tpu_custom_call.1} parent=1 // pred_fallthru
      _
    // Predicated region
    $region34: #{tpu_custom_call.1} parent=1 // pred_check
      _
    $region35: #{tpu_custom_call.1} parent=1 // pred_check_branch
      %222 = sbr.rel (0) target = $region37
    $region36: #{tpu_custom_call.1} parent=1 // pred_region
      %224 = dma.done [#allocation4], 16
    $region37: #{tpu_custom_call.1} parent=1 // pred_fallthru
      _
    %225 = sfence
    %226 = vsyncpa [#allocation3], 1
    %227 = vsyncpa [#allocation6], 1
    %228 = vsyncpa [#allocation4], 1

</llo_original>
